<compile_context>
chip_gen: v7x
topology: tpu7x:2x2x1
jax: 0.10.0
libtpu: 0.0.40
codegen_flags: <defaults>
</compile_context>

<pallas_src>
import jax
import jax.numpy as jnp
from jax.experimental import pallas as pl
from jax.experimental.pallas import tpu as pltpu


def _round_up(v, m):
    return ((v + m - 1) // m) * m


def _pick_block_batch(B, hw, cmid_p, vmem_budget_bytes=8 << 20):
    """Images per grid step: keep >=2 grid steps (v7x has 2 TensorCores) and
    keep the f32 conv intermediate (Bc*HW*Cmid_p*4 B) inside a small budget
    sized for v7x's 64 MiB/TC (the tightest generation)."""
    max_bc = max(1, B // 2)
    while max_bc > 1 and max_bc * hw * cmid_p * 4 > vmem_budget_bytes:
        max_bc -= 1
    for bc in range(max_bc, 0, -1):
        if B % bc == 0:
            return bc
    return 1


def _duster_feature_kernel(col_ref, wk_ref, bc_ref, pm_ref, wf_ref, bf_ref, out_ref):
    """Fused Conv3x3(pad=1) -> ReLU -> GlobalAvgPool -> Linear for Bc images.

    col_ref : (Bc, HW, 9*Cin)   bf16 im2col slab for this image chunk
    wk_ref  : (9*Cin, Cmid_p)   bf16 conv weight (lane-padded)
    bc_ref  : (1, Cmid_p)       f32 conv bias (zero-padded)
    pm_ref  : (Bc, Bc*HW)       bf16 block-diagonal pooling matrix (1/HW entries)
    wf_ref  : (Cmid_p, Dp)      bf16 fc weight (zero-padded)
    bf_ref  : (1, Dp)           f32 fc bias (zero-padded)
    out_ref : (1, Bc, Dp)       f32 features for this chunk
    """
    bc_n, hw, kdim = col_ref.shape
    xs = col_ref[...].reshape(bc_n * hw, kdim)                      # (Bc*HW, 9*Cin) bf16

    # Conv as one K = 9*Cin matmul, f32 accumulate on the MXU.
    conv = jnp.dot(xs, wk_ref[...], preferred_element_type=jnp.float32)
    conv = jnp.maximum(conv + bc_ref[...], 0.0)                     # bias + ReLU (f32, VPU)

    # Global average pool on the MXU (block-diagonal 1/HW matrix), f32 accumulate.
    pooled = jnp.dot(pm_ref[...], conv.astype(pm_ref.dtype),
                     preferred_element_type=jnp.float32)            # (Bc, Cmid_p)

    # FC: bf16 operands, f32 accumulate.
    feat = jnp.dot(pooled.astype(wf_ref.dtype), wf_ref[...],
                   preferred_element_type=jnp.float32) + bf_ref[...]
    out_ref[0] = feat.astype(out_ref.dtype)                         # lane-dense store


def duster_forward(x, conv_w, conv_b, fc_w, fc_b, centroids):
    """Equivalent of Duster.forward: returns (centroids, features)."""
    B, Cin, H, W = x.shape
    Cmid = conv_w.shape[0]
    D = fc_w.shape[0]
    HW = H * W
    K9 = 9 * Cin
    Cmid_p = _round_up(Cmid, 128)
    Dp = _round_up(D, 128)
    Bc = _pick_block_batch(B, HW, Cmid_p)
    n_steps = B // Bc

    # ---- cheap host-side layout prep (one tiny bf16 im2col slab + packed weights) ----
    xp = jnp.pad(x, ((0, 0), (0, 0), (1, 1), (1, 1)))               # (B, Cin, H+2, W+2)
    taps = [jnp.transpose(xp[:, :, di:di + H, dj:dj + W], (0, 2, 3, 1))
            for di in range(3) for dj in range(3)]
    col = jnp.concatenate(taps, axis=-1).reshape(B, HW, K9)
    col = col.astype(jnp.bfloat16)                                  # (B, HW, 9*Cin)

    # Weight rows ordered (di, dj, ci) to match the im2col column order.
    wk = jnp.transpose(conv_w, (2, 3, 1, 0)).reshape(K9, Cmid)
    wk = jnp.pad(wk, ((0, 0), (0, Cmid_p - Cmid))).astype(jnp.bfloat16)
    bc = jnp.pad(conv_b, (0, Cmid_p - Cmid)).reshape(1, Cmid_p).astype(jnp.float32)
    pm = (jnp.repeat(jnp.eye(Bc, dtype=jnp.float32), HW, axis=1) / HW
          ).astype(jnp.bfloat16)                                    # (Bc, Bc*HW)
    wf = jnp.pad(fc_w.T, ((0, Cmid_p - Cmid), (0, Dp - D))).astype(jnp.bfloat16)
    bf = jnp.pad(fc_b, (0, Dp - D)).reshape(1, Dp).astype(jnp.float32)

    cost = pl.CostEstimate(
        flops=(2 * B * HW * K9 * Cmid_p          # conv
               + 2 * B * Bc * HW * Cmid_p        # pool (MXU)
               + 2 * B * Cmid_p * Dp),           # fc
        transcendentals=0,
        bytes_accessed=(col.size * 2 + wk.size * 2 + bc.size * 4 + pm.size * 2
                        + wf.size * 2 + bf.size * 4 + B * Dp * 4),
    )

    # Actual per-core working set (double-buffered IO + f32 conv intermediate),
    # with 2x headroom; keeps the request small for v7x's 64 MiB VMEM.
    vmem_need = (
        2 * Bc * HW * K9 * 2                                         # col, x2 buffers
        + 2 * (K9 * Cmid_p * 2 + Cmid_p * 4 + Bc * Bc * HW * 2
               + Cmid_p * Dp * 2 + Dp * 4)                           # weights, x2 buffers
        + 2 * Bc * Dp * 4                                            # out, x2 buffers
        + 2 * Bc * HW * Cmid_p * 4                                   # conv f32 + bf16 copy
    )
    vmem_limit = int(max(2 << 20, 2 * vmem_need))

    out = pl.pallas_call(
        _duster_feature_kernel,
        out_shape=jax.ShapeDtypeStruct((n_steps, Bc, Dp), jnp.float32),
        grid=(n_steps,),
        in_specs=[
            pl.BlockSpec((Bc, HW, K9), lambda s: (s, 0, 0)),
            pl.BlockSpec((K9, Cmid_p), lambda s: (0, 0)),
            pl.BlockSpec((1, Cmid_p), lambda s: (0, 0)),
            pl.BlockSpec((Bc, Bc * HW), lambda s: (0, 0)),
            pl.BlockSpec((Cmid_p, Dp), lambda s: (0, 0)),
            pl.BlockSpec((1, Dp), lambda s: (0, 0)),
        ],
        out_specs=pl.BlockSpec((1, Bc, Dp), lambda s: (s, 0, 0)),
        compiler_params=pltpu.CompilerParams(
            dimension_semantics=("parallel",),
            vmem_limit_bytes=vmem_limit,
        ),
        cost_estimate=cost,
    )(col, wk, bc, pm, wf, bf)

    feat = out.reshape(B, Dp)[:, :D]
    # Duster returns the centroid parameter untouched alongside the features.
    return centroids, feat


def _reference_features(x, conv_w, conv_b, fc_w, fc_b):
    """Pure-JAX reference of the stand-in feature extractor (f32)."""
    y = jax.lax.conv_general_dilated(
        x, conv_w, window_strides=(1, 1), padding=((1, 1), (1, 1)),
        dimension_numbers=("NCHW", "OIHW", "NCHW"))
    y = jnp.maximum(y + conv_b[None, :, None, None], 0.0)
    pooled = jnp.mean(y, axis=(2, 3))
    return pooled @ fc_w.T + fc_b


if __name__ == "__main__":
    key = jax.random.PRNGKey(0)
    k1, k2, k3, k4, k5, k6 = jax.random.split(key, 6)

    # small shapes consistent with an image feature extractor
    B, Cin, H, W = 2, 4, 16, 16
    Cmid, D, K_clusters = 16, 32, 8

    x = jax.random.normal(k1, (B, Cin, H, W), dtype=jnp.float32)
    conv_w = 0.1 * jax.random.normal(k2, (Cmid, Cin, 3, 3), dtype=jnp.float32)
    conv_b = 0.1 * jax.random.normal(k3, (Cmid,), dtype=jnp.float32)
    fc_w = 0.1 * jax.random.normal(k4, (D, Cmid), dtype=jnp.float32)
    fc_b = 0.1 * jax.random.normal(k5, (D,), dtype=jnp.float32)
    centroids = jax.random.normal(k6, (K_clusters, D), dtype=jnp.float32)

    c_out, feats = duster_forward(x, conv_w, conv_b, fc_w, fc_b, centroids)
    jax.block_until_ready((c_out, feats))

    assert c_out.shape == (K_clusters, D) and c_out.dtype == jnp.float32
    assert feats.shape == (B, D) and feats.dtype == jnp.float32

    ref = _reference_features(x, conv_w, conv_b, fc_w, fc_b)
    assert bool(jnp.allclose(feats, ref, atol=2e-2, rtol=2e-2)), (
        float(jnp.max(jnp.abs(feats - ref))))

    print("KERNEL_OK")
</pallas_src>

<mosaic_0001>
module attributes {stable_mosaic.version = 11 : i64} {
  func.func @_duster_feature_kernel(%arg0: i32, %arg1: memref<1x256x36xbf16, #tpu.memory_space<vmem>>, %arg2: memref<36x128xbf16, #tpu.memory_space<vmem>>, %arg3: memref<1x128xf32, #tpu.memory_space<vmem>>, %arg4: memref<1x256xbf16, #tpu.memory_space<vmem>>, %arg5: memref<128x128xbf16, #tpu.memory_space<vmem>>, %arg6: memref<1x128xf32, #tpu.memory_space<vmem>>, %arg7: memref<1x1x128xf32, #tpu.memory_space<vmem>>) attributes {dimension_semantics = [#tpu.dimension_semantics<parallel>], iteration_bounds = array<i64: 2>, scalar_prefetch = 0 : i64, scratch_operands = 0 : i64, tpu.core_type = #tpu.core_type<tc>, window_params = [{transform_indices = @transform_0, window_bounds = array<i64: 1, 256, 36>}, {pipeline_mode = #tpu.pipeline_mode<synchronous>, transform_indices = @transform_1, window_bounds = array<i64: 36, 128>}, {pipeline_mode = #tpu.pipeline_mode<synchronous>, transform_indices = @transform_2, window_bounds = array<i64: 1, 128>}, {pipeline_mode = #tpu.pipeline_mode<synchronous>, transform_indices = @transform_3, window_bounds = array<i64: 1, 256>}, {pipeline_mode = #tpu.pipeline_mode<synchronous>, transform_indices = @transform_4, window_bounds = array<i64: 128, 128>}, {pipeline_mode = #tpu.pipeline_mode<synchronous>, transform_indices = @transform_5, window_bounds = array<i64: 1, 128>}, {transform_indices = @transform_6, window_bounds = array<i64: 1, 1, 128>}]} {
    %c0 = arith.constant 0 : index
    %c0_0 = arith.constant 0 : index
    %c0_1 = arith.constant 0 : index
    %0 = vector.load %arg1[%c0, %c0_0, %c0_1] : memref<1x256x36xbf16, #tpu.memory_space<vmem>>, vector<1x256x36xbf16>
    %1 = vector.shape_cast %0 : vector<1x256x36xbf16> to vector<256x36xbf16>
    %c0_2 = arith.constant 0 : index
    %c0_3 = arith.constant 0 : index
    %2 = vector.load %arg2[%c0_2, %c0_3] : memref<36x128xbf16, #tpu.memory_space<vmem>>, vector<36x128xbf16>
    %cst = arith.constant dense<0.000000e+00> : vector<256x128xf32>
    %3 = tpu.matmul %1, %2, %cst {dimension_numbers = #tpu.dot_dimension_numbers<[1], [0], [0], [1], [0, 0, 1, 1], [], []>} : vector<256x36xbf16>, vector<36x128xbf16>, vector<256x128xf32> -> vector<256x128xf32>
    %c0_4 = arith.constant 0 : index
    %c0_5 = arith.constant 0 : index
    %4 = vector.load %arg3[%c0_4, %c0_5] : memref<1x128xf32, #tpu.memory_space<vmem>>, vector<1x128xf32>
    %5 = vector.broadcast %4 : vector<1x128xf32> to vector<256x128xf32>
    %6 = arith.addf %3, %5 : vector<256x128xf32>
    %cst_6 = arith.constant 0.000000e+00 : f32
    %7 = vector.broadcast %cst_6 : f32 to vector<256x128xf32>
    %8 = arith.maximumf %6, %7 : vector<256x128xf32>
    %c0_7 = arith.constant 0 : index
    %c0_8 = arith.constant 0 : index
    %9 = vector.load %arg4[%c0_7, %c0_8] : memref<1x256xbf16, #tpu.memory_space<vmem>>, vector<1x256xbf16>
    %10 = arith.truncf %8 : vector<256x128xf32> to vector<256x128xbf16>
    %cst_9 = arith.constant dense<0.000000e+00> : vector<1x128xf32>
    %11 = tpu.matmul %9, %10, %cst_9 {dimension_numbers = #tpu.dot_dimension_numbers<[1], [0], [0], [1], [0, 0, 1, 1], [], []>} : vector<1x256xbf16>, vector<256x128xbf16>, vector<1x128xf32> -> vector<1x128xf32>
    %12 = arith.truncf %11 : vector<1x128xf32> to vector<1x128xbf16>
    %c0_10 = arith.constant 0 : index
    %c0_11 = arith.constant 0 : index
    %13 = vector.load %arg5[%c0_10, %c0_11] : memref<128x128xbf16, #tpu.memory_space<vmem>>, vector<128x128xbf16>
    %cst_12 = arith.constant dense<0.000000e+00> : vector<1x128xf32>
    %14 = tpu.matmul %12, %13, %cst_12 {dimension_numbers = #tpu.dot_dimension_numbers<[1], [0], [0], [1], [0, 0, 1, 1], [], []>} : vector<1x128xbf16>, vector<128x128xbf16>, vector<1x128xf32> -> vector<1x128xf32>
    %c0_13 = arith.constant 0 : index
    %c0_14 = arith.constant 0 : index
    %15 = vector.load %arg6[%c0_13, %c0_14] : memref<1x128xf32, #tpu.memory_space<vmem>>, vector<1x128xf32>
    %16 = arith.addf %14, %15 : vector<1x128xf32>
    %c0_15 = arith.constant 0 : index
    %c0_16 = arith.constant 0 : index
    %c0_17 = arith.constant 0 : index
    %17 = vector.load %arg7[%c0_15, %c0_16, %c0_17] : memref<1x1x128xf32, #tpu.memory_space<vmem>>, vector<1x1x128xf32>
    %18 = vector.shape_cast %17 : vector<1x1x128xf32> to vector<1x128xf32>
    %19 = vector.shape_cast %16 : vector<1x128xf32> to vector<1x1x128xf32>
    tpu.vector_store %arg7[%c0_15, %c0_16, %c0_17], %19 {strides = array<i32>} : memref<1x1x128xf32, #tpu.memory_space<vmem>>, vector<1x1x128xf32>,
    return
  }
  func.func @transform_0(%arg0: i32) -> (i32, i32, i32) {
    %c0_i32 = arith.constant 0 : i32
    %c0_i32_0 = arith.constant 0 : i32
    %c0_i32_1 = arith.constant 0 : i32
    return %arg0, %c0_i32, %c0_i32_0 : i32, i32, i32
  }
  func.func @transform_1(%arg0: i32) -> (i32, i32) {
    %c0_i32 = arith.constant 0 : i32
    %c0_i32_0 = arith.constant 0 : i32
    %c0_i32_1 = arith.constant 0 : i32
    return %c0_i32, %c0_i32_0 : i32, i32
  }
  func.func @transform_2(%arg0: i32) -> (i32, i32) {
    %c0_i32 = arith.constant 0 : i32
    %c0_i32_0 = arith.constant 0 : i32
    %c0_i32_1 = arith.constant 0 : i32
    return %c0_i32, %c0_i32_0 : i32, i32
  }
  func.func @transform_3(%arg0: i32) -> (i32, i32) {
    %c0_i32 = arith.constant 0 : i32
    %c0_i32_0 = arith.constant 0 : i32
    %c0_i32_1 = arith.constant 0 : i32
    return %c0_i32, %c0_i32_0 : i32, i32
  }
  func.func @transform_4(%arg0: i32) -> (i32, i32) {
    %c0_i32 = arith.constant 0 : i32
    %c0_i32_0 = arith.constant 0 : i32
    %c0_i32_1 = arith.constant 0 : i32
    return %c0_i32, %c0_i32_0 : i32, i32
  }
  func.func @transform_5(%arg0: i32) -> (i32, i32) {
    %c0_i32 = arith.constant 0 : i32
    %c0_i32_0 = arith.constant 0 : i32
    %c0_i32_1 = arith.constant 0 : i32
    return %c0_i32, %c0_i32_0 : i32, i32
  }
  func.func @transform_6(%arg0: i32) -> (i32, i32, i32) {
    %c0_i32 = arith.constant 0 : i32
    %c0_i32_0 = arith.constant 0 : i32
    %c0_i32_1 = arith.constant 0 : i32
    return %arg0, %c0_i32, %c0_i32_0 : i32, i32, i32
  }
}

</mosaic_0001>

<llo_original>
// kernel: tpu_custom_call.1
$region0: #{tpu_custom_call.1}
  #allocation0 [shape = 'u32[]', space=smem, size = 0x4, offset = 0x4, fixed_abs, tag = 'smem constant byte address 0x4 - core index']
  #allocation1 [shape = 'u32[144,128]{1,0:T(1,128)}', space=vmem, size = 0x12000, scoped, tag = 'internal scratch']
  %s0 = inlined_call_operand.vmem [shape: bf16[2,256,36], index: 0, kind: input, shape index: {}]
  %s1 = inlined_call_operand.vmem [shape: bf16[36,128], index: 1, kind: input, shape index: {}]
  %s2 = inlined_call_operand.vmem [shape: f32[1,128], index: 2, kind: input, shape index: {}]
  %s3 = inlined_call_operand.vmem [shape: bf16[1,256], index: 3, kind: input, shape index: {}]
  %s4 = inlined_call_operand.vmem [shape: bf16[128,128], index: 4, kind: input, shape index: {}]
  %s5 = inlined_call_operand.vmem [shape: f32[1,128], index: 5, kind: input, shape index: {}]
  %s6 = inlined_call_operand.hbm [shape: f32[2,1,128], index: 6, kind: output, shape index: {}]
  %s7 = sld [smem:[#allocation0]]
  $region57: #{tpu_custom_call.1} parent=0
    _
  %s9 = ssub.s32 1, %s7
  %s10 = scalar_select 0, %s9, %s7
  $region1: #{tpu_custom_call.1} parent=0
    #allocation2 [shape = 'u8[1024]{0}', space=vmem, size = 0x400, scoped, tag = 'output window, operand 0']
    #allocation3 [shape = 's32[2]{0}', space=sflag, size = 0x8, scoped, tag = 'scoped memory for tpu_custom_call.1']
    %11 = vsyncpa [#allocation3], 0
    %s12 = scalar_lea.sflag [#allocation3], 1
    %13 = vsyncpa %s12, 0
    loop: start=0, step=1, limit=4
    $region2: #{tpu_custom_call.1} parent=1 // loop_pre_header
      _
    $region3: #{tpu_custom_call.1} parent=1 // loop_header
      %s15 = sphi 0, %s19
      %p16 = scmp.ge.s32.totalorder %s15, 4
      %s25 = sphi 0, %s27
      %s28 = sphi 0, %s25
      %s29 = sphi 0, %s28
      %s45 = sphi 0, %s29
      %s49 = sphi 0, %s49
      %s51 = sphi 0, %s49
      %s52 = sphi 0, %s51
      %s66 = sphi 0, %s52
      %s70 = sphi 0, %s70
      %s72 = sphi 0, %s70
      %s73 = sphi 0, %s72
      %s87 = sphi 0, %s73
      %s91 = sphi 0, %s91
      %s93 = sphi 0, %s91
      %s94 = sphi 0, %s93
      %s108 = sphi 0, %s94
      %s112 = sphi 0, %s112
      %s114 = sphi 0, %s112
      %s115 = sphi 0, %s114
      %s129 = sphi 0, %s115
      %s133 = sphi 0, %s133
      %s135 = sphi 0, %s133
      %s136 = sphi 0, %s135
      %s150 = sphi 0, %s136
      %s156 = sphi 0, %s158
      %s159 = sphi 0, %s156
      %s160 = sphi 0, %s159
      %s176 = sphi 0, %s160
    $region4: #{tpu_custom_call.1} parent=1 // loop_header_branch
      %18 = sbr.rel (%p16) target = $region8
    $region5: #{tpu_custom_call.1} parent=1 // loop_body
      %s20 = ssub.s32 %s15, 1
      %s21 = ssub.s32 %s15, 2
      %s22 = sadd.s32 %s15, 1
      %s23 = ssub.s32 %s15, %s22
      %p24 = scmp.eq.s32.totalorder %s23, 0
      %s26 = sadd.s32 %s25, 1
      %s27 = scalar_select %p24, %s25, %s26
      %p30 = pneg %p24
      %p31 = scmp.eq.s32.totalorder %s15, 1
      %p32 = por %p30, %p31
      %p33 = scmp.ne.s32.totalorder %s25, %s28
      %p34 = scmp.eq.s32.totalorder %s15, 0
      %p35 = por %p33, %p34
      %p36 = scmp.ne.s32.totalorder %s25, %s28
      %p37 = scmp.eq.s32.totalorder %s20, 1
      %p38 = por %p36, %p37
      %p39 = scmp.ne.s32.totalorder %s28, %s29
      %p40 = scmp.eq.s32.totalorder %s20, 0
      %p41 = por %p39, %p40
      %p42 = scmp.ne.s32.totalorder %s28, %s29
      %p43 = scmp.eq.s32.totalorder %s21, 1
      %p44 = por %p42, %p43
      %p46 = scmp.ne.s32.totalorder %s29, %s45
      %p47 = scmp.eq.s32.totalorder %s21, 0
      %p48 = por %p46, %p47
      %s50 = sadd.s32 %s49, 1
      %p53 = scmp.eq.s32.totalorder %s15, 1
      %p54 = scmp.ne.s32.totalorder %s49, %s51
      %p55 = scmp.eq.s32.totalorder %s15, 0
      %p56 = por %p54, %p55
      %p57 = scmp.ne.s32.totalorder %s49, %s51
      %p58 = scmp.eq.s32.totalorder %s20, 1
      %p59 = por %p57, %p58
      %p60 = scmp.ne.s32.totalorder %s51, %s52
      %p61 = scmp.eq.s32.totalorder %s20, 0
      %p62 = por %p60, %p61
      %p63 = scmp.ne.s32.totalorder %s51, %s52
      %p64 = scmp.eq.s32.totalorder %s21, 1
      %p65 = por %p63, %p64
      %p67 = scmp.ne.s32.totalorder %s52, %s66
      %p68 = scmp.eq.s32.totalorder %s21, 0
      %p69 = por %p67, %p68
      %s71 = sadd.s32 %s70, 1
      %p74 = scmp.eq.s32.totalorder %s15, 1
      %p75 = scmp.ne.s32.totalorder %s70, %s72
      %p76 = scmp.eq.s32.totalorder %s15, 0
      %p77 = por %p75, %p76
      %p78 = scmp.ne.s32.totalorder %s70, %s72
      %p79 = scmp.eq.s32.totalorder %s20, 1
      %p80 = por %p78, %p79
      %p81 = scmp.ne.s32.totalorder %s72, %s73
      %p82 = scmp.eq.s32.totalorder %s20, 0
      %p83 = por %p81, %p82
      %p84 = scmp.ne.s32.totalorder %s72, %s73
      %p85 = scmp.eq.s32.totalorder %s21, 1
      %p86 = por %p84, %p85
      %p88 = scmp.ne.s32.totalorder %s73, %s87
      %p89 = scmp.eq.s32.totalorder %s21, 0
      %p90 = por %p88, %p89
      %s92 = sadd.s32 %s91, 1
      %p95 = scmp.eq.s32.totalorder %s15, 1
      %p96 = scmp.ne.s32.totalorder %s91, %s93
      %p97 = scmp.eq.s32.totalorder %s15, 0
      %p98 = por %p96, %p97
      %p99 = scmp.ne.s32.totalorder %s91, %s93
      %p100 = scmp.eq.s32.totalorder %s20, 1
      %p101 = por %p99, %p100
      %p102 = scmp.ne.s32.totalorder %s93, %s94
      %p103 = scmp.eq.s32.totalorder %s20, 0
      %p104 = por %p102, %p103
      %p105 = scmp.ne.s32.totalorder %s93, %s94
      %p106 = scmp.eq.s32.totalorder %s21, 1
      %p107 = por %p105, %p106
      %p109 = scmp.ne.s32.totalorder %s94, %s108
      %p110 = scmp.eq.s32.totalorder %s21, 0
      %p111 = por %p109, %p110
      %s113 = sadd.s32 %s112, 1
      %p116 = scmp.eq.s32.totalorder %s15, 1
      %p117 = scmp.ne.s32.totalorder %s112, %s114
      %p118 = scmp.eq.s32.totalorder %s15, 0
      %p119 = por %p117, %p118
      %p120 = scmp.ne.s32.totalorder %s112, %s114
      %p121 = scmp.eq.s32.totalorder %s20, 1
      %p122 = por %p120, %p121
      %p123 = scmp.ne.s32.totalorder %s114, %s115
      %p124 = scmp.eq.s32.totalorder %s20, 0
      %p125 = por %p123, %p124
      %p126 = scmp.ne.s32.totalorder %s114, %s115
      %p127 = scmp.eq.s32.totalorder %s21, 1
      %p128 = por %p126, %p127
      %p130 = scmp.ne.s32.totalorder %s115, %s129
      %p131 = scmp.eq.s32.totalorder %s21, 0
      %p132 = por %p130, %p131
      %s134 = sadd.s32 %s133, 1
      %p137 = scmp.eq.s32.totalorder %s15, 1
      %p138 = scmp.ne.s32.totalorder %s133, %s135
      %p139 = scmp.eq.s32.totalorder %s15, 0
      %p140 = por %p138, %p139
      %p141 = scmp.ne.s32.totalorder %s133, %s135
      %p142 = scmp.eq.s32.totalorder %s20, 1
      %p143 = por %p141, %p142
      %p144 = scmp.ne.s32.totalorder %s135, %s136
      %p145 = scmp.eq.s32.totalorder %s20, 0
      %p146 = por %p144, %p145
      %p147 = scmp.ne.s32.totalorder %s135, %s136
      %p148 = scmp.eq.s32.totalorder %s21, 1
      %p149 = por %p147, %p148
      %p151 = scmp.ne.s32.totalorder %s136, %s150
      %p152 = scmp.eq.s32.totalorder %s21, 0
      %p153 = por %p151, %p152
      %s154 = ssub.s32 %s15, %s22
      %p155 = scmp.eq.s32.totalorder %s154, 0
      %s157 = sadd.s32 %s156, 1
      %s158 = scalar_select %p155, %s156, %s157
      %p161 = pneg %p155
      %p162 = scmp.eq.s32.totalorder %s15, 1
      %p163 = por %p161, %p162
      %p164 = scmp.ne.s32.totalorder %s156, %s159
      %p165 = scmp.eq.s32.totalorder %s15, 0
      %p166 = por %p164, %p165
      %p167 = scmp.ne.s32.totalorder %s156, %s159
      %p168 = scmp.eq.s32.totalorder %s20, 1
      %p169 = por %p167, %p168
      %p170 = scmp.ne.s32.totalorder %s159, %s160
      %p171 = scmp.eq.s32.totalorder %s20, 0
      %p172 = por %p170, %p171
      %p173 = scmp.ne.s32.totalorder %s159, %s160
      %p174 = scmp.eq.s32.totalorder %s21, 1
      %p175 = por %p173, %p174
      %p177 = scmp.ne.s32.totalorder %s160, %s176
      %p178 = scmp.eq.s32.totalorder %s21, 0
      %p179 = por %p177, %p178
      %p180 = scmp.le.s32.totalorder 1, %s15
      %p181 = scmp.lt.s32.totalorder %s15, 3
      %p182 = pnand %p180, %p181
      %p183 = pneg %p182
      // Predicated region
      $region9: #{tpu_custom_call.1} parent=5 // pred_check
        _
      $region10: #{tpu_custom_call.1} parent=5 // pred_check_branch
        %185 = sbr.rel (%p182) target = $region12
      $region11: #{tpu_custom_call.1} parent=5 // pred_region
        %s186 = ssub.s32 %s15, 1
        // Predicated region
        $region13: #{tpu_custom_call.1} parent=11 // pred_check
          %p187 = pneg %p62
        $region14: #{tpu_custom_call.1} parent=11 // pred_check_branch
          %189 = sbr.rel (%p187) target = $region16
        $region15: #{tpu_custom_call.1} parent=11 // pred_region
          _
        $region16: #{tpu_custom_call.1} parent=11 // pred_fallthru
          _
        // Predicated region
        $region17: #{tpu_custom_call.1} parent=11 // pred_check
          %p190 = pneg %p83
        $region18: #{tpu_custom_call.1} parent=11 // pred_check_branch
          %192 = sbr.rel (%p190) target = $region20
        $region19: #{tpu_custom_call.1} parent=11 // pred_region
          _
        $region20: #{tpu_custom_call.1} parent=11 // pred_fallthru
          _
        // Predicated region
        $region21: #{tpu_custom_call.1} parent=11 // pred_check
          %p193 = pneg %p104
        $region22: #{tpu_custom_call.1} parent=11 // pred_check_branch
          %195 = sbr.rel (%p193) target = $region24
        $region23: #{tpu_custom_call.1} parent=11 // pred_region
          _
        $region24: #{tpu_custom_call.1} parent=11 // pred_fallthru
          _
        // Predicated region
        $region25: #{tpu_custom_call.1} parent=11 // pred_check
          %p196 = pneg %p125
        $region26: #{tpu_custom_call.1} parent=11 // pred_check_branch
          %198 = sbr.rel (%p196) target = $region28
        $region27: #{tpu_custom_call.1} parent=11 // pred_region
          _
        $region28: #{tpu_custom_call.1} parent=11 // pred_fallthru
          _
        // Predicated region
        $region29: #{tpu_custom_call.1} parent=11 // pred_check
          %p199 = pneg %p146
        $region30: #{tpu_custom_call.1} parent=11 // pred_check_branch
          %201 = sbr.rel (%p199) target = $region32
        $region31: #{tpu_custom_call.1} parent=11 // pred_region
          _
        $region32: #{tpu_custom_call.1} parent=11 // pred_fallthru
          _
      $region12: #{tpu_custom_call.1} parent=5 // pred_fallthru
        _
      %p202 = scmp.lt.s32.totalorder %s15, 2
      // Predicated region
      $region33: #{tpu_custom_call.1} parent=5 // pred_check
        %p203 = pneg %p202
      $region34: #{tpu_custom_call.1} parent=5 // pred_check_branch
        %205 = sbr.rel (%p203) target = $region36
      $region35: #{tpu_custom_call.1} parent=5 // pred_region
        // Predicated region
        $region37: #{tpu_custom_call.1} parent=35 // pred_check
          %p206 = pneg %p35
        $region38: #{tpu_custom_call.1} parent=35 // pred_check_branch
          %208 = sbr.rel (%p206) target = $region40
        $region39: #{tpu_custom_call.1} parent=35 // pred_region
          %p209 = scmp.lt.s32.totalorder %s15, 1
          %s210 = scalar_select %p209, %s15, 1
          %s211 = smul.addr %s210, 32
          %s212 = smul.addr %s211, 4
          %s213 = scalar_lea.vmem %s0, %s212
        $region40: #{tpu_custom_call.1} parent=35 // pred_fallthru
          _
      $region36: #{tpu_custom_call.1} parent=5 // pred_fallthru
        _
      %p214 = scmp.le.s32.totalorder 1, %s15
      %p215 = scmp.lt.s32.totalorder %s15, 3
      %p216 = pnand %p214, %p215
      %p217 = pneg %p216
      // Predicated region
      $region41: #{tpu_custom_call.1} parent=5 // pred_check
        _
      $region42: #{tpu_custom_call.1} parent=5 // pred_check_branch
        %219 = sbr.rel (%p216) target = $region44
      $region43: #{tpu_custom_call.1} parent=5 // pred_region
        %s220 = ssub.s32 %s15, 1
        %p221 = scmp.lt.s32.totalorder %s20, 1
        %s222 = scalar_select %p221, %s20, 1
        %s223 = smul.addr %s222, 32
        %s224 = smul.addr %s223, 4
        %s225 = scalar_lea.vmem %s0, %s224
        %p226 = pneg %p41
        %p227 = pneg %p38
        %p228 = pneg %p62
        %p229 = pneg %p59
        %p230 = pneg %p83
        %p231 = pneg %p80
        %p232 = pneg %p104
        %p233 = pneg %p101
        %p234 = pneg %p125
        %p235 = pneg %p122
        %p236 = pneg %p146
        %p237 = pneg %p143
        %p238 = pneg %p172
        %p239 = pneg %p169
        %s240 = sand.u32 %s159, 1
        %s241 = scalar_lea.sflag [#allocation3], %s240
        %s242 = sand.u32 %s159, 1
        %s243 = scalar_lea.vmem [#allocation2], %s242
        %p244 = scmp.lt.s32.totalorder %s20, 1
        %s245 = scalar_select %p244, %s20, 1
        %s246 = smul.addr %s245, 32
        %s247 = smul.addr %s246, 4
        %s248 = scalar_lea.vmem %s0, %s247
        %v250 = vld [vmem:[%s248] sm:$0xf]
        %v251 = vld [vmem:[%s248 + $0x4] sm:$0xf]
        %v252 = vld [vmem:[%s248 + $0x8] sm:$0xf]
        %v253 = vld [vmem:[%s248 + $0xc] sm:$0xf]
        %v254 = vld [vmem:[%s248 + $0x10] sm:$0xf]
        %v255 = vld [vmem:[%s248 + $0x14] sm:$0xf]
        %v256 = vld [vmem:[%s248 + $0x18] sm:$0xf]
        %v257 = vld [vmem:[%s248 + $0x1c] sm:$0xf]
        %v258 = vld [vmem:[%s248 + $0x20] sm:$0xf]
        %v259 = vld [vmem:[%s248 + $0x24] sm:$0xf]
        %v260 = vld [vmem:[%s248 + $0x28] sm:$0xf]
        %v261 = vld [vmem:[%s248 + $0x2c] sm:$0xf]
        %v262 = vld [vmem:[%s248 + $0x30] sm:$0xf]
        %v263 = vld [vmem:[%s248 + $0x34] sm:$0xf]
        %v264 = vld [vmem:[%s248 + $0x38] sm:$0xf]
        %v265 = vld [vmem:[%s248 + $0x3c] sm:$0xf]
        %v266 = vld [vmem:[%s248 + $0x40] sm:$0xf]
        %v267 = vld [vmem:[%s248 + $0x44] sm:$0xf]
        %v268 = vld [vmem:[%s248 + $0x48] sm:$0xf]
        %v269 = vld [vmem:[%s248 + $0x4c] sm:$0xf]
        %v270 = vld [vmem:[%s248 + $0x50] sm:$0xf]
        %v271 = vld [vmem:[%s248 + $0x54] sm:$0xf]
        %v272 = vld [vmem:[%s248 + $0x58] sm:$0xf]
        %v273 = vld [vmem:[%s248 + $0x5c] sm:$0xf]
        %v274 = vld [vmem:[%s248 + $0x60] sm:$0xf]
        %v275 = vld [vmem:[%s248 + $0x64] sm:$0xf]
        %v276 = vld [vmem:[%s248 + $0x68] sm:$0xf]
        %v277 = vld [vmem:[%s248 + $0x6c] sm:$0xf]
        %v278 = vld [vmem:[%s248 + $0x70] sm:$0xf]
        %v279 = vld [vmem:[%s248 + $0x74] sm:$0xf]
        %v280 = vld [vmem:[%s248 + $0x78] sm:$0xf]
        %v281 = vld [vmem:[%s248 + $0x7c] sm:$0xf]
        %v282 = vld [vmem:[%s1] sm:$0xf]
        %v283 = vld [vmem:[%s1 + $0x4] sm:$0xf]
        %v284 = vld [vmem:[%s1 + $0x8] sm:$0xf]
        %v285 = vld [vmem:[%s1 + $0xc] sm:$0xf]
        %v286 = vld [vmem:[%s1 + $0x10] sm:$0x3]
        %v287 = vld [vmem:[%s2] sm:$0x1]
        %v289 = vlaneseq
        %v290 = vshrl.u32 %v289, 7
        %v291 = vsub.s32 0, %v290
        %v292 = vrot.slane %v287, %v291
        %v326 = vunpack.c.l.b16 %v250
        %v327 = vunpack.c.l.b16 %v251
        %v328 = vunpack.c.l.b16 %v252
        %v329 = vunpack.c.l.b16 %v253
        %v330 = vunpack.c.l.b16 %v254
        %v331 = vunpack.c.l.b16 %v255
        %v332 = vunpack.c.l.b16 %v256
        %v333 = vunpack.c.l.b16 %v257
        %v334 = vunpack.c.l.b16 %v258
        %v335 = vunpack.c.l.b16 %v259
        %v336 = vunpack.c.l.b16 %v260
        %v337 = vunpack.c.l.b16 %v261
        %v338 = vunpack.c.l.b16 %v262
        %v339 = vunpack.c.l.b16 %v263
        %v340 = vunpack.c.l.b16 %v264
        %v341 = vunpack.c.l.b16 %v265
        %v342 = vunpack.c.l.b16 %v266
        %v343 = vunpack.c.l.b16 %v267
        %v344 = vunpack.c.l.b16 %v268
        %v345 = vunpack.c.l.b16 %v269
        %v346 = vunpack.c.l.b16 %v270
        %v347 = vunpack.c.l.b16 %v271
        %v348 = vunpack.c.l.b16 %v272
        %v349 = vunpack.c.l.b16 %v273
        %v350 = vunpack.c.l.b16 %v274
        %v351 = vunpack.c.l.b16 %v275
        %v352 = vunpack.c.l.b16 %v276
        %v353 = vunpack.c.l.b16 %v277
        %v354 = vunpack.c.l.b16 %v278
        %v355 = vunpack.c.l.b16 %v279
        %v356 = vunpack.c.l.b16 %v280
        %v357 = vunpack.c.l.b16 %v281
        %v358 = vpack.c.b16 %v327, %v326
        %v359 = vpack.c.b16 %v329, %v328
        %v360 = vpack.c.b16 %v331, %v330
        %v361 = vpack.c.b16 %v333, %v332
        %v362 = vpack.c.b16 %v335, %v334
        %v363 = vpack.c.b16 %v337, %v336
        %v364 = vpack.c.b16 %v339, %v338
        %v365 = vpack.c.b16 %v341, %v340
        %v366 = vpack.c.b16 %v343, %v342
        %v367 = vpack.c.b16 %v345, %v344
        %v368 = vpack.c.b16 %v347, %v346
        %v369 = vpack.c.b16 %v349, %v348
        %v370 = vpack.c.b16 %v351, %v350
        %v371 = vpack.c.b16 %v353, %v352
        %v372 = vpack.c.b16 %v355, %v354
        %v373 = vpack.c.b16 %v357, %v356
        %v379 = vunpack.c.l.b16 %v282
        %v380 = vunpack.c.l.b16 %v283
        %v381 = vunpack.c.l.b16 %v284
        %v382 = vunpack.c.l.b16 %v285
        %v383 = vunpack.c.l.b16 %v286
        %v384 = vpack.c.b16 %v380, %v379
        %v385 = vpack.c.b16 %v382, %v381
        %v386 = vpack.c.b16 %v383, %v383
        %vm389 = vcmask 293888
        %v391 = vsel %vm389, %v358, 0
        %v394 = vsel %vm389, %v359, 0
        %v397 = vsel %vm389, %v360, 0
        %v400 = vsel %vm389, %v361, 0
        %v403 = vsel %vm389, %v362, 0
        %v406 = vsel %vm389, %v363, 0
        %v409 = vsel %vm389, %v364, 0
        %v412 = vsel %vm389, %v365, 0
        %v415 = vsel %vm389, %v366, 0
        %v418 = vsel %vm389, %v367, 0
        %v421 = vsel %vm389, %v368, 0
        %v424 = vsel %vm389, %v369, 0
        %v427 = vsel %vm389, %v370, 0
        %v430 = vsel %vm389, %v371, 0
        %v433 = vsel %vm389, %v372, 0
        %v436 = vsel %vm389, %v373, 0
        %vm438 = vcmask 1041408
        %v440 = vsel %vm438, %v386, 0
        %442 = vmatprep.subr.bf16.mxu0 0
        %443 = vmatpush1.bf16.msra.mxu0 %v384
        %444 = vmatprep.subr.bf16.mxu0 0
        %445 = vmatpush1.bf16.msra.mxu0 %v385
        %446 = vmatprep.subr.bf16.mxu0 0
        %447 = vmatpush1.bf16.msra.mxu0 %v440
        %448 = vmatprep.subr.bf16.mxu0 0
        %449 = vmatpush1.bf16.msra.mxu0 0
        %450 = vmatprep.subr.bf16.mxu0 0
        %451 = vmatpush1.bf16.msra.mxu0 0
        %452 = vmatprep.subr.bf16.mxu0 0
        %453 = vmatpush1.bf16.msra.mxu0 0
        %454 = vmatprep.subr.bf16.mxu0 0
        %455 = vmatpush1.bf16.msra.mxu0 0
        %456 = vmatprep.subr.bf16.mxu0 0
        %457 = vmatpush1.bf16.msra.mxu0 0
        %458 = vmatprep.subr.bf16.mxu0 0
        %459 = vmatpush1.bf16.msra.mxu0 0
        %460 = vmatprep.subr.bf16.mxu0 0
        %461 = vmatpush1.bf16.msra.mxu0 0
        %462 = vmatprep.subr.bf16.mxu0 0
        %463 = vmatpush1.bf16.msra.mxu0 0
        %464 = vmatprep.subr.bf16.mxu0 0
        %465 = vmatpush1.bf16.msra.mxu0 0
        %466 = vmatprep.subr.bf16.mxu0 0
        %467 = vmatpush1.bf16.msra.mxu0 0
        %468 = vmatprep.subr.bf16.mxu0 0
        %469 = vmatpush1.bf16.msra.mxu0 0
        %470 = vmatprep.subr.bf16.mxu0 0
        %471 = vmatpush1.bf16.msra.mxu0 0
        %472 = vmatprep.subr.bf16.mxu0 0
        %473 = vmatpush1.bf16.msra.mxu0 0
        %474 = vmatprep.mubr.bf16.mxu0 0
        %475 = vmatmul.mubr.bf16.gmra.mrb[0].mxu0 %v391
        %v476 = vpop.f32.mrb[0].mxu0
        %v477 = vadd.f32 %v292, %v476
        %v478 = vpop.f32.mrb[0].mxu0
        %v479 = vpop.f32.mrb[0].mxu0
        %v480 = vadd.f32 %v292, %v479
        %v481 = vpop.f32.mrb[0].mxu0
        %482 = vmatprep.mubr.bf16.mxu0 0
        %483 = vmatmul.mubr.bf16.gmra.mrb[0].mxu0 %v394
        %v484 = vpop.f32.mrb[0].mxu0
        %v485 = vadd.f32 %v292, %v484
        %v486 = vpop.f32.mrb[0].mxu0
        %v487 = vpop.f32.mrb[0].mxu0
        %v488 = vadd.f32 %v292, %v487
        %v489 = vpop.f32.mrb[0].mxu0
        %490 = vmatprep.mubr.bf16.mxu0 0
        %491 = vmatmul.mubr.bf16.gmra.mrb[0].mxu0 %v397
        %v492 = vpop.f32.mrb[0].mxu0
        %v493 = vadd.f32 %v292, %v492
        %v494 = vpop.f32.mrb[0].mxu0
        %v495 = vpop.f32.mrb[0].mxu0
        %v496 = vadd.f32 %v292, %v495
        %v497 = vpop.f32.mrb[0].mxu0
        %498 = vmatprep.mubr.bf16.mxu0 0
        %499 = vmatmul.mubr.bf16.gmra.mrb[0].mxu0 %v400
        %v500 = vpop.f32.mrb[0].mxu0
        %v501 = vadd.f32 %v292, %v500
        %v502 = vpop.f32.mrb[0].mxu0
        %v503 = vpop.f32.mrb[0].mxu0
        %v504 = vadd.f32 %v292, %v503
        %v505 = vpop.f32.mrb[0].mxu0
        %506 = vmatprep.mubr.bf16.mxu0 0
        %507 = vmatmul.mubr.bf16.gmra.mrb[0].mxu0 %v403
        %v508 = vpop.f32.mrb[0].mxu0
        %v509 = vadd.f32 %v292, %v508
        %v510 = vpop.f32.mrb[0].mxu0
        %v511 = vpop.f32.mrb[0].mxu0
        %v512 = vadd.f32 %v292, %v511
        %v513 = vpop.f32.mrb[0].mxu0
        %514 = vmatprep.mubr.bf16.mxu0 0
        %515 = vmatmul.mubr.bf16.gmra.mrb[0].mxu0 %v406
        %v516 = vpop.f32.mrb[0].mxu0
        %v517 = vadd.f32 %v292, %v516
        %v518 = vpop.f32.mrb[0].mxu0
        %v519 = vpop.f32.mrb[0].mxu0
        %v520 = vadd.f32 %v292, %v519
        %v521 = vpop.f32.mrb[0].mxu0
        %522 = vmatprep.mubr.bf16.mxu0 0
        %523 = vmatmul.mubr.bf16.gmra.mrb[0].mxu0 %v409
        %v524 = vpop.f32.mrb[0].mxu0
        %v525 = vadd.f32 %v292, %v524
        %v526 = vpop.f32.mrb[0].mxu0
        %v527 = vpop.f32.mrb[0].mxu0
        %v528 = vadd.f32 %v292, %v527
        %v529 = vpop.f32.mrb[0].mxu0
        %530 = vmatprep.mubr.bf16.mxu0 0
        %531 = vmatmul.mubr.bf16.gmra.mrb[0].mxu0 %v412
        %v532 = vpop.f32.mrb[0].mxu0
        %v533 = vadd.f32 %v292, %v532
        %v534 = vpop.f32.mrb[0].mxu0
        %v535 = vpop.f32.mrb[0].mxu0
        %v536 = vadd.f32 %v292, %v535
        %v537 = vpop.f32.mrb[0].mxu0
        %538 = vmatprep.mubr.bf16.mxu0 0
        %539 = vmatmul.mubr.bf16.gmra.mrb[0].mxu0 %v415
        %v540 = vpop.f32.mrb[0].mxu0
        %v541 = vadd.f32 %v292, %v540
        %v542 = vpop.f32.mrb[0].mxu0
        %v543 = vpop.f32.mrb[0].mxu0
        %v544 = vadd.f32 %v292, %v543
        %v545 = vpop.f32.mrb[0].mxu0
        %546 = vmatprep.mubr.bf16.mxu0 0
        %547 = vmatmul.mubr.bf16.gmra.mrb[0].mxu0 %v418
        %v548 = vpop.f32.mrb[0].mxu0
        %v549 = vadd.f32 %v292, %v548
        %v550 = vpop.f32.mrb[0].mxu0
        %v551 = vpop.f32.mrb[0].mxu0
        %v552 = vadd.f32 %v292, %v551
        %v553 = vpop.f32.mrb[0].mxu0
        %554 = vmatprep.mubr.bf16.mxu0 0
        %555 = vmatmul.mubr.bf16.gmra.mrb[0].mxu0 %v421
        %v556 = vpop.f32.mrb[0].mxu0
        %v557 = vadd.f32 %v292, %v556
        %v558 = vpop.f32.mrb[0].mxu0
        %v559 = vpop.f32.mrb[0].mxu0
        %v560 = vadd.f32 %v292, %v559
        %v561 = vpop.f32.mrb[0].mxu0
        %562 = vmatprep.mubr.bf16.mxu0 0
        %563 = vmatmul.mubr.bf16.gmra.mrb[0].mxu0 %v424
        %v564 = vpop.f32.mrb[0].mxu0
        %v565 = vadd.f32 %v292, %v564
        %v566 = vpop.f32.mrb[0].mxu0
        %v567 = vpop.f32.mrb[0].mxu0
        %v568 = vadd.f32 %v292, %v567
        %v569 = vpop.f32.mrb[0].mxu0
        %570 = vmatprep.mubr.bf16.mxu0 0
        %571 = vmatmul.mubr.bf16.gmra.mrb[0].mxu0 %v427
        %v572 = vpop.f32.mrb[0].mxu0
        %v573 = vadd.f32 %v292, %v572
        %v574 = vpop.f32.mrb[0].mxu0
        %v575 = vpop.f32.mrb[0].mxu0
        %v576 = vadd.f32 %v292, %v575
        %v577 = vpop.f32.mrb[0].mxu0
        %578 = vmatprep.mubr.bf16.mxu0 0
        %579 = vmatmul.mubr.bf16.gmra.mrb[0].mxu0 %v430
        %v580 = vpop.f32.mrb[0].mxu0
        %v581 = vadd.f32 %v292, %v580
        %v582 = vpop.f32.mrb[0].mxu0
        %v583 = vpop.f32.mrb[0].mxu0
        %v584 = vadd.f32 %v292, %v583
        %v585 = vpop.f32.mrb[0].mxu0
        %586 = vmatprep.mubr.bf16.mxu0 0
        %587 = vmatmul.mubr.bf16.gmra.mrb[0].mxu0 %v433
        %v588 = vpop.f32.mrb[0].mxu0
        %v589 = vadd.f32 %v292, %v588
        %v590 = vpop.f32.mrb[0].mxu0
        %v591 = vpop.f32.mrb[0].mxu0
        %v592 = vadd.f32 %v292, %v591
        %v593 = vpop.f32.mrb[0].mxu0
        %594 = vmatprep.mubr.bf16.mxu0 0
        %595 = vmatmul.mubr.bf16.gmra.mrb[0].mxu0 %v436
        %v596 = vpop.f32.mrb[0].mxu0
        %v597 = vadd.f32 %v292, %v596
        %v598 = vpop.f32.mrb[0].mxu0
        %v599 = vpop.f32.mrb[0].mxu0
        %v600 = vadd.f32 %v292, %v599
        %v601 = vpop.f32.mrb[0].mxu0
        %602 = vdwg.mxu0
        %v603 = vmax.f32 %v477, 0.0
        %v604 = vmax.f32 %v480, 0.0
        %v605 = vmax.f32 %v485, 0.0
        %v606 = vmax.f32 %v488, 0.0
        %v607 = vmax.f32 %v493, 0.0
        %v608 = vmax.f32 %v496, 0.0
        %v609 = vmax.f32 %v501, 0.0
        %v610 = vmax.f32 %v504, 0.0
        %v611 = vmax.f32 %v509, 0.0
        %v612 = vmax.f32 %v512, 0.0
        %v613 = vmax.f32 %v517, 0.0
        %v614 = vmax.f32 %v520, 0.0
        %v615 = vmax.f32 %v525, 0.0
        %v616 = vmax.f32 %v528, 0.0
        %v617 = vmax.f32 %v533, 0.0
        %v618 = vmax.f32 %v536, 0.0
        %v619 = vmax.f32 %v541, 0.0
        %v620 = vmax.f32 %v544, 0.0
        %v621 = vmax.f32 %v549, 0.0
        %v622 = vmax.f32 %v552, 0.0
        %v623 = vmax.f32 %v557, 0.0
        %v624 = vmax.f32 %v560, 0.0
        %v625 = vmax.f32 %v565, 0.0
        %v626 = vmax.f32 %v568, 0.0
        %v627 = vmax.f32 %v573, 0.0
        %v628 = vmax.f32 %v576, 0.0
        %v629 = vmax.f32 %v581, 0.0
        %v630 = vmax.f32 %v584, 0.0
        %v631 = vmax.f32 %v589, 0.0
        %v632 = vmax.f32 %v592, 0.0
        %v633 = vmax.f32 %v597, 0.0
        %v634 = vmax.f32 %v600, 0.0
        %v635 = vld [vmem:[%s3] sm:$0x3]
        %v636 = vpack.c.bf16 %v604, %v603
        %v637 = vpack.c.bf16 %v606, %v605
        %v638 = vpack.c.bf16 %v608, %v607
        %v639 = vpack.c.bf16 %v610, %v609
        %v640 = vpack.c.bf16 %v612, %v611
        %v641 = vpack.c.bf16 %v614, %v613
        %v642 = vpack.c.bf16 %v616, %v615
        %v643 = vpack.c.bf16 %v618, %v617
        %v644 = vpack.c.bf16 %v620, %v619
        %v645 = vpack.c.bf16 %v622, %v621
        %v646 = vpack.c.bf16 %v624, %v623
        %v647 = vpack.c.bf16 %v626, %v625
        %v648 = vpack.c.bf16 %v628, %v627
        %v649 = vpack.c.bf16 %v630, %v629
        %v650 = vpack.c.bf16 %v632, %v631
        %v651 = vpack.c.bf16 %v634, %v633
        %v654 = vunpack.c.l.s4 1966171168
        %v655 = vunpack.c.0.s8 %v654
        %v656 = vlaneseq
        %v657 = vshrl.u32 %v656, 7
        %v658 = vsub.s32 %v655, %v657
        %v659 = vrot.slane %v635, %v658
        %v660 = vcombine.high %v659, %v659
        %v662 = vunpack.c.l.s4 1966171168
        %v663 = vunpack.c.0.s8 %v662
        %v664 = vlaneseq
        %v665 = vshrl.u32 %v664, 7
        %v666 = vsub.s32 %v663, %v665
        %v667 = vrot.slane %v659, %v666
        %v669 = vunpack.c.l.s4 1966171168
        %v670 = vunpack.c.0.s8 %v669
        %v671 = vlaneseq
        %v672 = vshrl.u32 %v671, 7
        %v673 = vsub.s32 %v670, %v672
        %v674 = vrot.slane %v660, %v673
        %677 = vmatprep.subr.bf16.mxu0 0
        %678 = vmatpush1.bf16.msra.mxu0 %v636
        %679 = vmatprep.subr.bf16.mxu0 0
        %680 = vmatpush1.bf16.msra.mxu0 %v637
        %681 = vmatprep.subr.bf16.mxu0 0
        %682 = vmatpush1.bf16.msra.mxu0 %v638
        %683 = vmatprep.subr.bf16.mxu0 0
        %684 = vmatpush1.bf16.msra.mxu0 %v639
        %685 = vmatprep.subr.bf16.mxu0 0
        %686 = vmatpush1.bf16.msra.mxu0 %v640
        %687 = vmatprep.subr.bf16.mxu0 0
        %688 = vmatpush1.bf16.msra.mxu0 %v641
        %689 = vmatprep.subr.bf16.mxu0 0
        %690 = vmatpush1.bf16.msra.mxu0 %v642
        %691 = vmatprep.subr.bf16.mxu0 0
        %692 = vmatpush1.bf16.msra.mxu0 %v643
        %693 = vmatprep.subr.bf16.mxu0 0
        %694 = vmatpush1.bf16.msra.mxu0 %v644
        %695 = vmatprep.subr.bf16.mxu0 0
        %696 = vmatpush1.bf16.msra.mxu0 %v645
        %697 = vmatprep.subr.bf16.mxu0 0
        %698 = vmatpush1.bf16.msra.mxu0 %v646
        %699 = vmatprep.subr.bf16.mxu0 0
        %700 = vmatpush1.bf16.msra.mxu0 %v647
        %701 = vmatprep.subr.bf16.mxu0 0
        %702 = vmatpush1.bf16.msra.mxu0 %v648
        %703 = vmatprep.subr.bf16.mxu0 0
        %704 = vmatpush1.bf16.msra.mxu0 %v649
        %705 = vmatprep.subr.bf16.mxu0 0
        %706 = vmatpush1.bf16.msra.mxu0 %v650
        %707 = vmatprep.subr.bf16.mxu0 0
        %708 = vmatpush1.bf16.msra.mxu0 %v651
        %709 = vmatprep.mubr.bf16.mxu0 %v674
        %710 = vmatmul.mubr.bf16.gmra.mrb[0].mxu0 %v667
        %v711 = vpop.f32.mrb[0].mxu0
        %v712 = vadd.f32 0.0, %v711
        %v713 = vpop.f32.mrb[0].mxu0
        %v714 = vpop.f32.mrb[0].mxu0
        %v715 = vpop.f32.mrb[0].mxu0
        %716 = vdwg.mxu0
        %v717 = vpack.c.bf16 %v712, %v712
        %v718 = vld [vmem:[%s4] sm:$0xf]
        %v719 = vld [vmem:[%s4 + $0x4] sm:$0xf]
        %v720 = vld [vmem:[%s4 + $0x8] sm:$0xf]
        %v721 = vld [vmem:[%s4 + $0xc] sm:$0xf]
        %v722 = vld [vmem:[%s4 + $0x10] sm:$0xf]
        %v723 = vld [vmem:[%s4 + $0x14] sm:$0xf]
        %v724 = vld [vmem:[%s4 + $0x18] sm:$0xf]
        %v725 = vld [vmem:[%s4 + $0x1c] sm:$0xf]
        %v726 = vld [vmem:[%s4 + $0x20] sm:$0xf]
        %v727 = vld [vmem:[%s4 + $0x24] sm:$0xf]
        %v728 = vld [vmem:[%s4 + $0x28] sm:$0xf]
        %v729 = vld [vmem:[%s4 + $0x2c] sm:$0xf]
        %v730 = vld [vmem:[%s4 + $0x30] sm:$0xf]
        %v731 = vld [vmem:[%s4 + $0x34] sm:$0xf]
        %v732 = vld [vmem:[%s4 + $0x38] sm:$0xf]
        %v733 = vld [vmem:[%s4 + $0x3c] sm:$0xf]
        %v734 = vld [vmem:[%s5] sm:$0x1]
        %v751 = vunpack.c.l.b16 %v718
        %v752 = vunpack.c.l.b16 %v719
        %v753 = vunpack.c.l.b16 %v720
        %v754 = vunpack.c.l.b16 %v721
        %v755 = vunpack.c.l.b16 %v722
        %v756 = vunpack.c.l.b16 %v723
        %v757 = vunpack.c.l.b16 %v724
        %v758 = vunpack.c.l.b16 %v725
        %v759 = vunpack.c.l.b16 %v726
        %v760 = vunpack.c.l.b16 %v727
        %v761 = vunpack.c.l.b16 %v728
        %v762 = vunpack.c.l.b16 %v729
        %v763 = vunpack.c.l.b16 %v730
        %v764 = vunpack.c.l.b16 %v731
        %v765 = vunpack.c.l.b16 %v732
        %v766 = vunpack.c.l.b16 %v733
        %v767 = vpack.c.b16 %v752, %v751
        %v768 = vpack.c.b16 %v754, %v753
        %v769 = vpack.c.b16 %v756, %v755
        %v770 = vpack.c.b16 %v758, %v757
        %v771 = vpack.c.b16 %v760, %v759
        %v772 = vpack.c.b16 %v762, %v761
        %v773 = vpack.c.b16 %v764, %v763
        %v774 = vpack.c.b16 %v766, %v765
        %783 = vmatprep.subr.bf16.mxu0 0
        %784 = vmatpush1.bf16.msra.mxu0 %v767
        %785 = vmatprep.subr.bf16.mxu0 0
        %786 = vmatpush1.bf16.msra.mxu0 %v768
        %787 = vmatprep.subr.bf16.mxu0 0
        %788 = vmatpush1.bf16.msra.mxu0 %v769
        %789 = vmatprep.subr.bf16.mxu0 0
        %790 = vmatpush1.bf16.msra.mxu0 %v770
        %791 = vmatprep.subr.bf16.mxu0 0
        %792 = vmatpush1.bf16.msra.mxu0 %v771
        %793 = vmatprep.subr.bf16.mxu0 0
        %794 = vmatpush1.bf16.msra.mxu0 %v772
        %795 = vmatprep.subr.bf16.mxu0 0
        %796 = vmatpush1.bf16.msra.mxu0 %v773
        %797 = vmatprep.subr.bf16.mxu0 0
        %798 = vmatpush1.bf16.msra.mxu0 %v774
        %799 = vmatprep.subr.bf16.mxu0 0
        %800 = vmatpush1.bf16.msra.mxu0 0
        %801 = vmatprep.subr.bf16.mxu0 0
        %802 = vmatpush1.bf16.msra.mxu0 0
        %803 = vmatprep.subr.bf16.mxu0 0
        %804 = vmatpush1.bf16.msra.mxu0 0
        %805 = vmatprep.subr.bf16.mxu0 0
        %806 = vmatpush1.bf16.msra.mxu0 0
        %807 = vmatprep.subr.bf16.mxu0 0
        %808 = vmatpush1.bf16.msra.mxu0 0
        %809 = vmatprep.subr.bf16.mxu0 0
        %810 = vmatpush1.bf16.msra.mxu0 0
        %811 = vmatprep.subr.bf16.mxu0 0
        %812 = vmatpush1.bf16.msra.mxu0 0
        %813 = vmatprep.subr.bf16.mxu0 0
        %814 = vmatpush1.bf16.msra.mxu0 0
        %815 = vmatprep.mubr.bf16.mxu0 0
        %816 = vmatmul.mubr.bf16.gmra.mrb[0].mxu0 %v717
        %v817 = vpop.f32.mrb[0].mxu0
        %v818 = vadd.f32 %v734, %v817
        %v819 = vpop.f32.mrb[0].mxu0
        %v820 = vpop.f32.mrb[0].mxu0
        %v821 = vpop.f32.mrb[0].mxu0
        %822 = vdwg.mxu0
        %823 = vst [vmem:[%s243] sm:$0x1] %v818
        %s824 = sand.u32 %s159, 1
        %s825 = scalar_lea.sflag [#allocation3], %s824
        %s826 = sand.u32 %s159, 1
        %s827 = scalar_lea.vmem [#allocation2], %s826
        // Predicated region
        $region45: #{tpu_custom_call.1} parent=43 // pred_check
          %p828 = pneg %p169
        $region46: #{tpu_custom_call.1} parent=43 // pred_check_branch
          %830 = sbr.rel (%p828) target = $region48
        $region47: #{tpu_custom_call.1} parent=43 // pred_region
          %s832 = ssub.s32 16, 16
          %833 = vsyncadd %s825, %s832
          %s834 = smul.addr %s20, 16
          %s835 = scalar_lea.hbm %s6, %s834
          %s837 = sshll.u32 %s827, 4
          %s838 = int_to_ptr.vmem [resolvable:$true] %s837
          %840 = dma.vmem_to_hbm [thread:$0]  %s838, 16, %s835, %s825
        $region48: #{tpu_custom_call.1} parent=43 // pred_fallthru
          _
      $region44: #{tpu_custom_call.1} parent=5 // pred_fallthru
        _
      %p841 = scmp.le.s32.totalorder 2, %s15
      // Predicated region
      $region49: #{tpu_custom_call.1} parent=5 // pred_check
        %p842 = pneg %p841
      $region50: #{tpu_custom_call.1} parent=5 // pred_check_branch
        %844 = sbr.rel (%p842) target = $region52
      $region51: #{tpu_custom_call.1} parent=5 // pred_region
        %s845 = ssub.s32 %s15, 2
        // Predicated region
        $region53: #{tpu_custom_call.1} parent=51 // pred_check
          %p846 = pneg %p175
        $region54: #{tpu_custom_call.1} parent=51 // pred_check_branch
          %848 = sbr.rel (%p846) target = $region56
        $region55: #{tpu_custom_call.1} parent=51 // pred_region
          %s849 = sand.u32 %s160, 1
          %s850 = scalar_lea.sflag [#allocation3], %s849
          %s851 = sand.u32 %s160, 1
          %s852 = scalar_lea.vmem [#allocation2], %s851
          %853 = dma.done %s850, 16
        $region56: #{tpu_custom_call.1} parent=51 // pred_fallthru
          _
      $region52: #{tpu_custom_call.1} parent=5 // pred_fallthru
        _
    $region6: #{tpu_custom_call.1} parent=1 // loop_footer
      %s19 = sadd.s32 1, %s15
    $region7: #{tpu_custom_call.1} parent=1 // loop_footer_branch
      %14 = sbr.rel target = $region3
    $region8: #{tpu_custom_call.1} parent=1 // loop_exit
      _
    %854 = vsyncpa [#allocation3], 1
    %s855 = scalar_lea.sflag [#allocation3], 1
    %856 = vsyncpa %s855, 1

</llo_original>
